<compile_context>
chip_gen: v5e
topology: v5e:2x2
jax: 0.10.0
libtpu: 0.0.40
codegen_flags: <defaults>
</compile_context>

<pallas_src>
import functools

import jax
import jax.numpy as jnp
from jax.experimental import pallas as pl
from jax.experimental.pallas import tpu as pltpu


def _round_up(a, b):
    return (a + b - 1) // b * b


def _patch_embed_kernel(p_ref, w_ref, b_ref, g_ref, beta_ref, o_ref, *, eps,
                        true_d):
    # p_ref: (tm, Kp)   patch rows (zero-padded along K)
    # w_ref: (Kp, Dp)   projection weight (Conv2d weight flattened/transposed)
    # b_ref/g_ref/beta_ref: (1, Dp)  bias / LN gamma / LN beta (zero-padded)
    # o_ref: (tm, Dp)
    y = jnp.dot(p_ref[...], w_ref[...], preferred_element_type=jnp.float32)
    y = y + b_ref[...].astype(jnp.float32)

    # One-pass LayerNorm statistics over the true embed_dim.  Padded columns
    # of y are exactly zero (zero weight cols + zero bias), so they contribute
    # nothing to the sums.
    inv_d = 1.0 / float(true_d)
    s = jnp.sum(y, axis=-1, keepdims=True)
    s2 = jnp.sum(y * y, axis=-1, keepdims=True)
    mu = s * inv_d
    var = jnp.maximum(s2 * inv_d - mu * mu, 0.0)
    y = (y - mu) * jax.lax.rsqrt(var + eps)
    y = y * g_ref[...].astype(jnp.float32) + beta_ref[...].astype(jnp.float32)
    o_ref[...] = y.astype(o_ref.dtype)


@functools.partial(jax.jit,
                   static_argnames=("patch_size", "eps", "tm", "use_bf16"))
def _patch_embed_impl(x, conv_w, conv_b, ln_g, ln_b, *, patch_size, eps, tm,
                      use_bf16):
    B, C, H, W = x.shape
    ph, pw = patch_size
    Hp, Wp = H // ph, W // pw
    N = Hp * Wp
    D = conv_w.shape[0]
    K = C * ph * pw
    M = B * N

    # Padded sizes -> clean (8,128)-aligned tiles and lane-dense stores.
    Kp = _round_up(K, 128)
    Dp = _round_up(D, 128)

    in_bytes = 2 if use_bf16 else 4
    out_bytes = jnp.dtype(x.dtype).itemsize

    # Effective row tile: multiple of 8, no larger than (padded) M, and small
    # enough that double-buffered blocks fit comfortably in VMEM (safe budget
    # for v7x's 64 MiB parts; v5e/v6e have more headroom).
    tm_eff = max(8, min(_round_up(tm, 8), _round_up(M, 8)))

    def _vmem_est(t):
        return (2 * t * Kp * in_bytes        # patch tiles (double-buffered)
                + 2 * Kp * Dp * in_bytes     # weight tiles
                + 2 * t * Dp * out_bytes     # output tiles
                + t * Dp * 4                 # f32 intermediate
                + 6 * Dp * 4)                # bias / gamma / beta

    vmem_budget = 28 * 1024 * 1024
    while tm_eff > 8 and _vmem_est(tm_eff) > vmem_budget:
        tm_eff = max(8, tm_eff // 2)

    Mp = _round_up(M, tm_eff)
    grid_m = Mp // tm_eff

    # --- layout glue (no compute) ----------------------------------------
    # Crop (stride==kernel conv drops any remainder), patchify, pad.
    # (B, C, Hp, ph, Wp, pw) -> (B, Hp, Wp, C, ph, pw) -> (B*N, K)
    x_c = x[:, :, :Hp * ph, :Wp * pw]
    patches = x_c.reshape(B, C, Hp, ph, Wp, pw)
    patches = jnp.transpose(patches, (0, 2, 4, 1, 3, 5)).reshape(M, K)
    patches = jnp.pad(patches, ((0, Mp - M), (0, Kp - K)))

    # Conv2d(kernel=stride=patch) as matmul: weight (D, C, ph, pw) -> (K, D)
    w_mat = jnp.pad(conv_w.reshape(D, K).T, ((0, Kp - K), (0, Dp - D)))
    b_mat = jnp.pad(conv_b, (0, Dp - D)).astype(jnp.float32).reshape(1, Dp)
    g_mat = jnp.pad(ln_g, (0, Dp - D)).astype(jnp.float32).reshape(1, Dp)
    beta_mat = jnp.pad(ln_b, (0, Dp - D)).astype(jnp.float32).reshape(1, Dp)

    if use_bf16:
        # MXU operands in bf16; accumulation and LayerNorm stay f32.
        patches = patches.astype(jnp.bfloat16)
        w_mat = w_mat.astype(jnp.bfloat16)
    else:
        patches = patches.astype(jnp.float32)
        w_mat = w_mat.astype(jnp.float32)

    kernel = functools.partial(_patch_embed_kernel, eps=eps, true_d=D)

    out = pl.pallas_call(
        kernel,
        out_shape=jax.ShapeDtypeStruct((Mp, Dp), x.dtype),
        grid=(grid_m,),
        in_specs=[
            pl.BlockSpec((tm_eff, Kp), lambda i: (i, 0)),
            pl.BlockSpec((Kp, Dp), lambda i: (0, 0)),   # resident weight
            pl.BlockSpec((1, Dp), lambda i: (0, 0)),
            pl.BlockSpec((1, Dp), lambda i: (0, 0)),
            pl.BlockSpec((1, Dp), lambda i: (0, 0)),
        ],
        out_specs=pl.BlockSpec((tm_eff, Dp), lambda i: (i, 0)),
        compiler_params=pltpu.CompilerParams(
            dimension_semantics=("parallel",),
            vmem_limit_bytes=48 * 1024 * 1024,
        ),
    )(patches, w_mat, b_mat, g_mat, beta_mat)

    return out[:M, :D].reshape(B, N, D)


def patch_embed_forward(x, conv_w, conv_b, ln_g, ln_b, *, patch_size,
                        eps=1e-5, tm=1024, use_bf16=False):
    """PVT PatchEmbed forward.

    x:       (B, C, H, W)  NCHW, matching PyTorch
    conv_w:  (embed_dim, C, ph, pw)  Conv2d weight layout
    conv_b:  (embed_dim,)
    ln_g:    (embed_dim,)  LayerNorm weight
    ln_b:    (embed_dim,)  LayerNorm bias
    returns: (x_out, (H', W')) with x_out of shape (B, N, embed_dim)
    """
    B, C, H, W = x.shape
    ph, pw = patch_size
    Hp, Wp = H // ph, W // pw
    out = _patch_embed_impl(x, conv_w, conv_b, ln_g, ln_b,
                            patch_size=(ph, pw), eps=eps, tm=tm,
                            use_bf16=use_bf16)
    return out, (Hp, Wp)


def _reference(x, conv_w, conv_b, ln_g, ln_b, patch_size, eps=1e-5):
    # Pure-JAX reference mirroring the PyTorch module semantics.
    ph, pw = patch_size
    y = jax.lax.conv_general_dilated(
        x.astype(jnp.float32), conv_w.astype(jnp.float32),
        window_strides=(ph, pw), padding="VALID",
        dimension_numbers=("NCHW", "OIHW", "NCHW"))
    y = y + conv_b.reshape(1, -1, 1, 1)
    B_, D, Hp, Wp = y.shape
    y = y.reshape(B_, D, Hp * Wp).transpose(0, 2, 1)  # (B, N, D)
    mu = jnp.mean(y, axis=-1, keepdims=True)
    var = jnp.mean((y - mu) ** 2, axis=-1, keepdims=True)
    y = (y - mu) / jnp.sqrt(var + eps)
    y = y * ln_g + ln_b
    return y, (Hp, Wp)


if __name__ == "__main__":
    # Small shapes consistent with the module: img=16, patch=4, C=4, D=32
    B, C, H, W = 2, 4, 16, 16
    patch_size = (4, 4)
    embed_dim = 32

    key = jax.random.PRNGKey(0)
    k1, k2, k3, k4, k5 = jax.random.split(key, 5)
    x = jax.random.normal(k1, (B, C, H, W), dtype=jnp.float32)
    conv_w = 0.05 * jax.random.normal(
        k2, (embed_dim, C, patch_size[0], patch_size[1]), dtype=jnp.float32)
    conv_b = 0.01 * jax.random.normal(k3, (embed_dim,), dtype=jnp.float32)
    ln_g = 1.0 + 0.05 * jax.random.normal(k4, (embed_dim,), dtype=jnp.float32)
    ln_b = 0.05 * jax.random.normal(k5, (embed_dim,), dtype=jnp.float32)

    ref, (Hp_r, Wp_r) = _reference(x, conv_w, conv_b, ln_g, ln_b, patch_size)

    # f32 MXU path: tight tolerance.
    out, (Hp, Wp) = patch_embed_forward(
        x, conv_w, conv_b, ln_g, ln_b, patch_size=patch_size)
    out = jax.block_until_ready(out)
    assert (Hp, Wp) == (Hp_r, Wp_r)
    assert out.shape == (B, Hp * Wp, embed_dim)
    assert jnp.allclose(out, ref, atol=1e-4, rtol=1e-4), "f32 mismatch"

    # bf16 MXU path (v6e/v7x fast path): looser tolerance, f32 LN math.
    out_bf16, _ = patch_embed_forward(
        x, conv_w, conv_b, ln_g, ln_b, patch_size=patch_size, use_bf16=True)
    out_bf16 = jax.block_until_ready(out_bf16)
    assert jnp.allclose(out_bf16, ref, atol=5e-2, rtol=5e-2), "bf16 mismatch"

    print("KERNEL_OK")
</pallas_src>

<mosaic_0001>
module attributes {stable_mosaic.version = 11 : i64} {
  func.func @_patch_embed_kernel(%arg0: i32, %arg1: memref<32x128xf32, #tpu.memory_space<vmem>>, %arg2: memref<128x128xf32, #tpu.memory_space<vmem>>, %arg3: memref<1x128xf32, #tpu.memory_space<vmem>>, %arg4: memref<1x128xf32, #tpu.memory_space<vmem>>, %arg5: memref<1x128xf32, #tpu.memory_space<vmem>>, %arg6: memref<32x128xf32, #tpu.memory_space<vmem>>) attributes {dimension_semantics = [#tpu.dimension_semantics<parallel>], iteration_bounds = array<i64: 1>, scalar_prefetch = 0 : i64, scratch_operands = 0 : i64, tpu.core_type = #tpu.core_type<tc>, window_params = [{transform_indices = @transform_0, window_bounds = array<i64: 32, 128>}, {pipeline_mode = #tpu.pipeline_mode<synchronous>, transform_indices = @transform_1, window_bounds = array<i64: 128, 128>}, {pipeline_mode = #tpu.pipeline_mode<synchronous>, transform_indices = @transform_2, window_bounds = array<i64: 1, 128>}, {pipeline_mode = #tpu.pipeline_mode<synchronous>, transform_indices = @transform_3, window_bounds = array<i64: 1, 128>}, {pipeline_mode = #tpu.pipeline_mode<synchronous>, transform_indices = @transform_4, window_bounds = array<i64: 1, 128>}, {transform_indices = @transform_5, window_bounds = array<i64: 32, 128>}]} {
    %c0 = arith.constant 0 : index
    %c0_0 = arith.constant 0 : index
    %0 = vector.load %arg1[%c0, %c0_0] : memref<32x128xf32, #tpu.memory_space<vmem>>, vector<32x128xf32>
    %c0_1 = arith.constant 0 : index
    %c0_2 = arith.constant 0 : index
    %1 = vector.load %arg2[%c0_1, %c0_2] : memref<128x128xf32, #tpu.memory_space<vmem>>, vector<128x128xf32>
    %cst = arith.constant dense<0.000000e+00> : vector<32x128xf32>
    %2 = tpu.matmul %0, %1, %cst {dimension_numbers = #tpu.dot_dimension_numbers<[1], [0], [0], [1], [0, 0, 1, 1], [], []>} : vector<32x128xf32>, vector<128x128xf32>, vector<32x128xf32> -> vector<32x128xf32>
    %c0_3 = arith.constant 0 : index
    %c0_4 = arith.constant 0 : index
    %3 = vector.load %arg3[%c0_3, %c0_4] : memref<1x128xf32, #tpu.memory_space<vmem>>, vector<1x128xf32>
    %4 = vector.broadcast %3 : vector<1x128xf32> to vector<32x128xf32>
    %5 = arith.addf %2, %4 : vector<32x128xf32>
    %cst_5 = arith.constant dense<0.000000e+00> : vector<32xf32>
    %6 = vector.multi_reduction <add>, %5, %cst_5 [1] : vector<32x128xf32> to vector<32xf32>
    %7 = vector.shape_cast %6 : vector<32xf32> to vector<32x1xf32>
    %8 = arith.mulf %5, %5 : vector<32x128xf32>
    %cst_6 = arith.constant dense<0.000000e+00> : vector<32xf32>
    %9 = vector.multi_reduction <add>, %8, %cst_6 [1] : vector<32x128xf32> to vector<32xf32>
    %10 = vector.shape_cast %9 : vector<32xf32> to vector<32x1xf32>
    %cst_7 = arith.constant 3.125000e-02 : f32
    %11 = vector.broadcast %cst_7 : f32 to vector<32x1xf32>
    %12 = arith.mulf %7, %11 : vector<32x1xf32>
    %cst_8 = arith.constant 3.125000e-02 : f32
    %13 = vector.broadcast %cst_8 : f32 to vector<32x1xf32>
    %14 = arith.mulf %10, %13 : vector<32x1xf32>
    %15 = arith.mulf %12, %12 : vector<32x1xf32>
    %16 = arith.subf %14, %15 : vector<32x1xf32>
    %cst_9 = arith.constant 0.000000e+00 : f32
    %17 = vector.broadcast %cst_9 : f32 to vector<32x1xf32>
    %18 = arith.maximumf %16, %17 : vector<32x1xf32>
    %19 = vector.broadcast %12 : vector<32x1xf32> to vector<32x128xf32>
    %20 = arith.subf %5, %19 : vector<32x128xf32>
    %cst_10 = arith.constant 9.99999974E-6 : f32
    %21 = vector.broadcast %cst_10 : f32 to vector<32x1xf32>
    %22 = arith.addf %18, %21 : vector<32x1xf32>
    %23 = math.rsqrt %22 : vector<32x1xf32>
    %24 = vector.broadcast %23 : vector<32x1xf32> to vector<32x128xf32>
    %25 = arith.mulf %20, %24 : vector<32x128xf32>
    %c0_11 = arith.constant 0 : index
    %c0_12 = arith.constant 0 : index
    %26 = vector.load %arg4[%c0_11, %c0_12] : memref<1x128xf32, #tpu.memory_space<vmem>>, vector<1x128xf32>
    %27 = vector.broadcast %26 : vector<1x128xf32> to vector<32x128xf32>
    %28 = arith.mulf %25, %27 : vector<32x128xf32>
    %c0_13 = arith.constant 0 : index
    %c0_14 = arith.constant 0 : index
    %29 = vector.load %arg5[%c0_13, %c0_14] : memref<1x128xf32, #tpu.memory_space<vmem>>, vector<1x128xf32>
    %30 = vector.broadcast %29 : vector<1x128xf32> to vector<32x128xf32>
    %31 = arith.addf %28, %30 : vector<32x128xf32>
    %c0_15 = arith.constant 0 : index
    %c0_16 = arith.constant 0 : index
    %32 = vector.load %arg6[%c0_15, %c0_16] : memref<32x128xf32, #tpu.memory_space<vmem>>, vector<32x128xf32>
    tpu.vector_store %arg6[%c0_15, %c0_16], %31 {strides = array<i32>} : memref<32x128xf32, #tpu.memory_space<vmem>>, vector<32x128xf32>,
    return
  }
  func.func @transform_0(%arg0: i32) -> (i32, i32) {
    %c0_i32 = arith.constant 0 : i32
    %c0_i32_0 = arith.constant 0 : i32
    return %arg0, %c0_i32 : i32, i32
  }
  func.func @transform_1(%arg0: i32) -> (i32, i32) {
    %c0_i32 = arith.constant 0 : i32
    %c0_i32_0 = arith.constant 0 : i32
    %c0_i32_1 = arith.constant 0 : i32
    return %c0_i32, %c0_i32_0 : i32, i32
  }
  func.func @transform_2(%arg0: i32) -> (i32, i32) {
    %c0_i32 = arith.constant 0 : i32
    %c0_i32_0 = arith.constant 0 : i32
    %c0_i32_1 = arith.constant 0 : i32
    return %c0_i32, %c0_i32_0 : i32, i32
  }
  func.func @transform_3(%arg0: i32) -> (i32, i32) {
    %c0_i32 = arith.constant 0 : i32
    %c0_i32_0 = arith.constant 0 : i32
    %c0_i32_1 = arith.constant 0 : i32
    return %c0_i32, %c0_i32_0 : i32, i32
  }
  func.func @transform_4(%arg0: i32) -> (i32, i32) {
    %c0_i32 = arith.constant 0 : i32
    %c0_i32_0 = arith.constant 0 : i32
    %c0_i32_1 = arith.constant 0 : i32
    return %c0_i32, %c0_i32_0 : i32, i32
  }
  func.func @transform_5(%arg0: i32) -> (i32, i32) {
    %c0_i32 = arith.constant 0 : i32
    %c0_i32_0 = arith.constant 0 : i32
    return %arg0, %c0_i32 : i32, i32
  }
}

</mosaic_0001>

<llo_original>
// kernel: _patch_embed_impl.1
$region0: #{_patch_embed_impl.1}
  #allocation0 [shape = 'u32[]', space=smem, size = 0x4, offset = 0x4, fixed_abs, tag = 'smem constant byte address 0x4 - core index']
  #allocation1 [shape = 'u32[72,128]{1,0:T(1,128)}', space=vmem, size = 0x9000, scoped, tag = 'internal scratch']
  %s0 = inlined_call_operand.vmem [shape: f32[32,128], index: 0, kind: input, shape index: {}]
  %s1 = inlined_call_operand.vmem [shape: f32[128,128], index: 1, kind: input, shape index: {}]
  %s2 = inlined_call_operand.vmem [shape: f32[1,128], index: 2, kind: input, shape index: {}]
  %s3 = inlined_call_operand.vmem [shape: f32[1,128], index: 3, kind: input, shape index: {}]
  %s4 = inlined_call_operand.vmem [shape: f32[1,128], index: 4, kind: input, shape index: {}]
  %s5 = inlined_call_operand.hbm [shape: f32[32,128], index: 5, kind: output, shape index: {}]
  %s6 = sld [smem:[#allocation0]]
  $region30: #{_patch_embed_impl.1} parent=0
    _
  %s8 = ssub.s32 1, %s6
  %s9 = scalar_select 0, %s8, %s6
  $region1: #{_patch_embed_impl.1} parent=0
    #allocation2 [shape = 'u8[16384]{0}', space=vmem, size = 0x4000, scoped, tag = 'output window, operand 0, single buffered']
    #allocation3 [shape = 's32[1]{0}', space=sflag, size = 0x4, scoped, tag = 'scoped memory for _patch_embed_impl.1']
    %10 = vsyncpa [#allocation3], 0
    // Predicated region
    $region2: #{_patch_embed_impl.1} parent=1 // pred_check
      _
    $region3: #{_patch_embed_impl.1} parent=1 // pred_check_branch
      %12 = sbr.rel (0) target = $region5
    $region4: #{_patch_embed_impl.1} parent=1 // pred_region
      _
    $region5: #{_patch_embed_impl.1} parent=1 // pred_fallthru
      _
    // Predicated region
    $region6: #{_patch_embed_impl.1} parent=1 // pred_check
      _
    $region7: #{_patch_embed_impl.1} parent=1 // pred_check_branch
      %14 = sbr.rel (0) target = $region9
    $region8: #{_patch_embed_impl.1} parent=1 // pred_region
      _
    $region9: #{_patch_embed_impl.1} parent=1 // pred_fallthru
      _
    // Predicated region
    $region10: #{_patch_embed_impl.1} parent=1 // pred_check
      _
    $region11: #{_patch_embed_impl.1} parent=1 // pred_check_branch
      %16 = sbr.rel (0) target = $region13
    $region12: #{_patch_embed_impl.1} parent=1 // pred_region
      _
    $region13: #{_patch_embed_impl.1} parent=1 // pred_fallthru
      _
    // Predicated region
    $region14: #{_patch_embed_impl.1} parent=1 // pred_check
      _
    $region15: #{_patch_embed_impl.1} parent=1 // pred_check_branch
      %18 = sbr.rel (0) target = $region17
    $region16: #{_patch_embed_impl.1} parent=1 // pred_region
      _
    $region17: #{_patch_embed_impl.1} parent=1 // pred_fallthru
      _
    // Predicated region
    $region18: #{_patch_embed_impl.1} parent=1 // pred_check
      _
    $region19: #{_patch_embed_impl.1} parent=1 // pred_check_branch
      %20 = sbr.rel (0) target = $region21
    $region20: #{_patch_embed_impl.1} parent=1 // pred_region
      _
    $region21: #{_patch_embed_impl.1} parent=1 // pred_fallthru
      _
    %v21 = vld [vmem:[%s0] sm:$0xff]
    %v22 = vld [vmem:[%s0 + $0x8] sm:$0xff]
    %v23 = vld [vmem:[%s0 + $0x10] sm:$0xff]
    %v24 = vld [vmem:[%s0 + $0x18] sm:$0xff]
    %v25 = vld [vmem:[%s1] sm:$0xff]
    %v26 = vld [vmem:[%s1 + $0x8] sm:$0xff]
    %v27 = vld [vmem:[%s1 + $0x10] sm:$0xff]
    %v28 = vld [vmem:[%s1 + $0x18] sm:$0xff]
    %v29 = vld [vmem:[%s1 + $0x20] sm:$0xff]
    %v30 = vld [vmem:[%s1 + $0x28] sm:$0xff]
    %v31 = vld [vmem:[%s1 + $0x30] sm:$0xff]
    %v32 = vld [vmem:[%s1 + $0x38] sm:$0xff]
    %v33 = vld [vmem:[%s1 + $0x40] sm:$0xff]
    %v34 = vld [vmem:[%s1 + $0x48] sm:$0xff]
    %v35 = vld [vmem:[%s1 + $0x50] sm:$0xff]
    %v36 = vld [vmem:[%s1 + $0x58] sm:$0xff]
    %v37 = vld [vmem:[%s1 + $0x60] sm:$0xff]
    %v38 = vld [vmem:[%s1 + $0x68] sm:$0xff]
    %v39 = vld [vmem:[%s1 + $0x70] sm:$0xff]
    %v40 = vld [vmem:[%s1 + $0x78] sm:$0xff]
    %v41 = vld [vmem:[%s2] sm:$0x1]
    %v43 = vperm.slane %v41, 0
    %45 = vmatpush.msra.mxu0 %v40
    %46 = vmatpush.msra.mxu0 %v39
    %47 = vmatpush.msra.mxu0 %v38
    %48 = vmatpush.msra.mxu0 %v37
    %49 = vmatpush.msra.mxu0 %v36
    %50 = vmatpush.msra.mxu0 %v35
    %51 = vmatpush.msra.mxu0 %v34
    %52 = vmatpush.msra.mxu0 %v33
    %53 = vmatpush.msra.mxu0 %v32
    %54 = vmatpush.msra.mxu0 %v31
    %55 = vmatpush.msra.mxu0 %v30
    %56 = vmatpush.msra.mxu0 %v29
    %57 = vmatpush.msra.mxu0 %v28
    %58 = vmatpush.msra.mxu0 %v27
    %59 = vmatpush.msra.mxu0 %v26
    %60 = vmatpush.msra.mxu0 %v25
    %61 = vmatmul.f32.gmra.mxu0 %v21
    %v62 = vpop.f32.mrf.mxu0
    %v63 = vadd.f32 %v43, %v62
    %64 = vmatmul.f32.gmra.mxu0 %v22
    %v65 = vpop.f32.mrf.mxu0
    %v66 = vadd.f32 %v43, %v65
    %67 = vmatmul.f32.gmra.mxu0 %v23
    %v68 = vpop.f32.mrf.mxu0
    %v69 = vadd.f32 %v43, %v68
    %70 = vmatmul.f32.gmra.mxu0 %v24
    %v71 = vpop.f32.mrf.mxu0
    %v72 = vadd.f32 %v43, %v71
    %73 = vdwg.mxu0
    %74 = vadd.xlane.f32.xlu0 %v63
    %v75 = vpop.xlane.xlu0 %74
    %76 = vadd.xlane.f32.xlu0 %v66
    %v77 = vpop.xlane.xlu0 %76
    %78 = vadd.xlane.f32.xlu0 %v69
    %v79 = vpop.xlane.xlu0 %78
    %80 = vadd.xlane.f32.xlu0 %v72
    %v81 = vpop.xlane.xlu0 %80
    %v82 = vmul.f32 %v63, %v63
    %v83 = vmul.f32 %v66, %v66
    %v84 = vmul.f32 %v69, %v69
    %v85 = vmul.f32 %v72, %v72
    %86 = vadd.xlane.f32.xlu0 %v82
    %v87 = vpop.xlane.xlu0 %86
    %88 = vadd.xlane.f32.xlu0 %v83
    %v89 = vpop.xlane.xlu0 %88
    %90 = vadd.xlane.f32.xlu0 %v84
    %v91 = vpop.xlane.xlu0 %90
    %92 = vadd.xlane.f32.xlu0 %v85
    %v93 = vpop.xlane.xlu0 %92
    %v94 = vmul.f32 %v75, 0.03125
    %v95 = vmul.f32 %v77, 0.03125
    %v96 = vmul.f32 %v79, 0.03125
    %v97 = vmul.f32 %v81, 0.03125
    %v98 = vmul.f32 %v87, 0.03125
    %v99 = vmul.f32 %v89, 0.03125
    %v100 = vmul.f32 %v91, 0.03125
    %v101 = vmul.f32 %v93, 0.03125
    %v102 = vmul.f32 %v94, %v94
    %v103 = vmul.f32 %v95, %v95
    %v104 = vmul.f32 %v96, %v96
    %v105 = vmul.f32 %v97, %v97
    %v106 = vsub.f32 %v98, %v102
    %v107 = vsub.f32 %v99, %v103
    %v108 = vsub.f32 %v100, %v104
    %v109 = vsub.f32 %v101, %v105
    %v110 = vmax.f32 %v106, 0.0
    %v111 = vmax.f32 %v107, 0.0
    %v112 = vmax.f32 %v108, 0.0
    %v113 = vmax.f32 %v109, 0.0
    %v114 = vsub.f32 %v63, %v94
    %v115 = vsub.f32 %v66, %v95
    %v116 = vsub.f32 %v69, %v96
    %v117 = vsub.f32 %v72, %v97
    %v118 = vadd.f32 %v110, 1e-05
    %v119 = vadd.f32 %v111, 1e-05
    %v120 = vadd.f32 %v112, 1e-05
    %v121 = vadd.f32 %v113, 1e-05
    %v122 = vrsqrt.pop %v118
    %v123 = vmul.f32 %v122, %v118
    %v124 = vmul.f32 %v123, %v122
    %v125 = vmul.f32 0.5, %v124
    %v126 = vsub.f32 1.5, %v125
    %v127 = vmul.f32 %v122, %v126
    %vm128 = vweird.f32 %v118
    %vm129 = vweird.f32 %v122
    %vm130 = vmor %vm128, %vm129
    %v131 = vsel %vm130, %v122, %v127
    %v132 = vrsqrt.pop %v119
    %v133 = vmul.f32 %v132, %v119
    %v134 = vmul.f32 %v133, %v132
    %v135 = vmul.f32 0.5, %v134
    %v136 = vsub.f32 1.5, %v135
    %v137 = vmul.f32 %v132, %v136
    %vm138 = vweird.f32 %v119
    %vm139 = vweird.f32 %v132
    %vm140 = vmor %vm138, %vm139
    %v141 = vsel %vm140, %v132, %v137
    %v142 = vrsqrt.pop %v120
    %v143 = vmul.f32 %v142, %v120
    %v144 = vmul.f32 %v143, %v142
    %v145 = vmul.f32 0.5, %v144
    %v146 = vsub.f32 1.5, %v145
    %v147 = vmul.f32 %v142, %v146
    %vm148 = vweird.f32 %v120
    %vm149 = vweird.f32 %v142
    %vm150 = vmor %vm148, %vm149
    %v151 = vsel %vm150, %v142, %v147
    %v152 = vrsqrt.pop %v121
    %v153 = vmul.f32 %v152, %v121
    %v154 = vmul.f32 %v153, %v152
    %v155 = vmul.f32 0.5, %v154
    %v156 = vsub.f32 1.5, %v155
    %v157 = vmul.f32 %v152, %v156
    %vm158 = vweird.f32 %v121
    %vm159 = vweird.f32 %v152
    %vm160 = vmor %vm158, %vm159
    %v161 = vsel %vm160, %v152, %v157
    %v162 = vmul.f32 %v114, %v131
    %v163 = vmul.f32 %v115, %v141
    %v164 = vmul.f32 %v116, %v151
    %v165 = vmul.f32 %v117, %v161
    %v166 = vld [vmem:[%s3] sm:$0x1]
    %v168 = vperm.slane %v166, 0
    %v170 = vmul.f32 %v162, %v168
    %v171 = vmul.f32 %v163, %v168
    %v172 = vmul.f32 %v164, %v168
    %v173 = vmul.f32 %v165, %v168
    %v174 = vld [vmem:[%s4] sm:$0x1]
    %v176 = vperm.slane %v174, 0
    %v178 = vadd.f32 %v170, %v176
    %v179 = vadd.f32 %v171, %v176
    %v180 = vadd.f32 %v172, %v176
    %v181 = vadd.f32 %v173, %v176
    %182 = vst [vmem:[#allocation2] sm:$0xff] %v178
    %183 = vst [vmem:[#allocation2 + $0x8] sm:$0xff] %v179
    %184 = vst [vmem:[#allocation2 + $0x10] sm:$0xff] %v180
    %185 = vst [vmem:[#allocation2 + $0x18] sm:$0xff] %v181
    // Predicated region
    $region22: #{_patch_embed_impl.1} parent=1 // pred_check
      _
    $region23: #{_patch_embed_impl.1} parent=1 // pred_check_branch
      %187 = sbr.rel (0) target = $region25
    $region24: #{_patch_embed_impl.1} parent=1 // pred_region
      %189 = vsyncadd [#allocation3], 0
      %s190 = sshll.u32 [#allocation2], 4
      %s191 = int_to_ptr.vmem [resolvable:$true] %s190
      %s192 = sshll.u32 %s5, 4
      %s193 = int_to_ptr.hbm [resolvable:$true] %s192
      %198 = dma.vmem_to_hbm [thread:$0]  %s191, 512, %s193, [#allocation3], 128, 128, 8
    $region25: #{_patch_embed_impl.1} parent=1 // pred_fallthru
      _
    // Predicated region
    $region26: #{_patch_embed_impl.1} parent=1 // pred_check
      _
    $region27: #{_patch_embed_impl.1} parent=1 // pred_check_branch
      %200 = sbr.rel (0) target = $region29
    $region28: #{_patch_embed_impl.1} parent=1 // pred_region
      %202 = dma.done [#allocation3], 512
    $region29: #{_patch_embed_impl.1} parent=1 // pred_fallthru
      _
    %203 = vsyncpa [#allocation3], 1

</llo_original>
